<compile_context>
chip_gen: v7x
topology: tpu7x:2x2x1
jax: 0.10.0
libtpu: 0.0.40
codegen_flags: <defaults>
</compile_context>

<pallas_src>
import functools

import jax
import jax.numpy as jnp
from jax.experimental import pallas as pl
from jax.experimental.pallas import tpu as pltpu

EPS = 1e-6  # diffusers ResnetBlock2D GroupNorm eps


# ------------------------------------------------------------------ tiling helpers
def _largest_divisor_leq(n, cap):
    cap = max(1, min(n, cap))
    for d in range(cap, 0, -1):
        if n % d == 0:
            return d
    return 1


def _pick_row_tile(H, W, C, bytes_per=4, budget=2 << 20):
    """Largest row tile (divisor of H) whose input slab stays under ~budget bytes."""
    cap = max(1, budget // max(1, W * C * bytes_per))
    return _largest_divisor_leq(H, cap)


def _pick_cout_tile(cout, target=512):
    """Cout tile: full Cout for small layers, else the largest 128-multiple divisor."""
    if cout <= target:
        return cout
    t = (target // 128) * 128
    while t >= 128:
        if cout % t == 0:
            return t
        t -= 128
    # TODO(synk): Cout > target and not a multiple of 128 -> add masked tail tiles.
    return cout


@functools.lru_cache(maxsize=1)
def _vmem_limit():
    """Scoped-VMEM budget: ~85% of physical, capped at 100 MiB (defaults are 16/32 MiB)."""
    try:
        cap = int(pltpu.get_tpu_info().vmem_capacity_bytes)
    except Exception:  # conservative fallback if the query is unavailable
        cap = 64 * 1024 * 1024
    return int(min(int(cap * 0.85), 100 * 1024 * 1024))


# -------------------------------------------------- kernel: per-channel GN moments
def _gn_moments_kernel(x_ref, o_ref):
    """Accumulate per-channel sum / sum-of-squares across the row-tile (reduction) axis."""
    i = pl.program_id(1)

    @pl.when(i == 0)
    def _():
        o_ref[...] = jnp.zeros_like(o_ref)

    C = x_ref.shape[-1]
    xt = x_ref[0].astype(jnp.float32).reshape(-1, C)
    mom = jnp.concatenate([jnp.sum(xt, axis=0, keepdims=True),
                           jnp.sum(xt * xt, axis=0, keepdims=True)], axis=0)
    o_ref[0] += mom


def gn_moments(x, row_tile=None):
    N, H, W, C = x.shape
    th = row_tile or _pick_row_tile(H, W, C)
    assert H % th == 0, (H, th)
    return pl.pallas_call(
        _gn_moments_kernel,
        out_shape=jax.ShapeDtypeStruct((N, 2, C), jnp.float32),
        grid=(N, H // th),
        in_specs=[pl.BlockSpec((1, th, W, C), lambda n, i: (n, i, 0, 0))],
        out_specs=pl.BlockSpec((1, 2, C), lambda n, i: (n, 0, 0)),
        compiler_params=pltpu.CompilerParams(
            dimension_semantics=("parallel", "arbitrary"),
            vmem_limit_bytes=_vmem_limit()),
    )(x)


def _gn_affine(mom, gamma, beta, groups, hw):
    """Fold GroupNorm stats + gamma/beta into per-(batch, channel) affine (a, b).

    The group combine runs in exact f32 XLA on a tiny (N, 2, C) tensor, so the GN
    statistics never go through a reduced-precision MXU pass (perf-review concern).
    """
    s, ss = mom[:, 0, :], mom[:, 1, :]
    N, C = s.shape
    cg = C // groups
    cnt = float(hw * cg)
    mean_g = s.reshape(N, groups, cg).sum(-1) / cnt
    var_g = jnp.maximum(ss.reshape(N, groups, cg).sum(-1) / cnt - mean_g * mean_g, 0.0)
    rstd_g = jax.lax.rsqrt(var_g + EPS)
    mean_c = jnp.repeat(mean_g, cg, axis=1)
    rstd_c = jnp.repeat(rstd_g, cg, axis=1)
    a = rstd_c * gamma[None, :]
    b = beta[None, :] - mean_c * a
    return jnp.stack([a, b], axis=1)  # (N, 2, C) f32


# ------------------------------------- kernel: normalize + SiLU + 3x3 conv (+ epilogue)
def _nsc_core(cur_ref, prev_ref, next_ref, ab_ref, w_ref, pad_ref, *, th, W, HT, cdt):
    """Normalize+SiLU the row tile (+halo rows) into the pad scratch and 3x3-conv it.

    pad_ref is a flat ((th+2)*W, Cin) slab in the compute dtype; it is fully overwritten
    every step (no re-zeroing).  Column padding is handled by pltpu.roll + a lane-position
    mask, so every slab read is a contiguous leading-axis slice (no misaligned windows).
    Returns a ((th*W), Cout_tile) f32 accumulator.
    """
    i = pl.program_id(2)
    C = cur_ref.shape[-1]
    tc = w_ref.shape[-1]
    rows = th * W
    a = ab_ref[0, 0:1, :]            # (1, C) f32
    b = ab_ref[0, 1:2, :]

    def norm_silu(v):                # (r, C) f32 -> f32
        y = v * a + b
        return y * jax.nn.sigmoid(y)

    # Interior rows + top/bottom halo rows (halo rows zeroed at the image border so the
    # conv sees SAME zero padding).
    pad_ref[W:W + rows, :] = norm_silu(
        cur_ref[0].astype(jnp.float32).reshape(rows, C)).astype(cdt)
    top_ok = jnp.where(i > 0, 1.0, 0.0)
    bot_ok = jnp.where(i < HT - 1, 1.0, 0.0)
    pad_ref[0:W, :] = (norm_silu(prev_ref[0, 0].astype(jnp.float32)) * top_ok).astype(cdt)
    pad_ref[W + rows:W + rows + W, :] = (
        norm_silu(next_ref[0, 0].astype(jnp.float32)) * bot_ok).astype(cdt)

    # Column-validity masks for the +/-1 kx taps (flattened (row, col) layout).
    wpos = jax.lax.broadcasted_iota(jnp.int32, (rows, 1), 0) % W
    not_first_col = wpos > 0
    not_last_col = wpos < W - 1

    acc = jnp.zeros((rows, tc), jnp.float32)
    for ky in range(3):
        slab = pad_ref[ky * W: ky * W + rows, :]          # contiguous, compute dtype
        # center tap
        acc = acc + jnp.dot(slab, w_ref[ky, 1], preferred_element_type=jnp.float32)
        # left tap (reads col w-1): shift +1 along the flattened axis, mask col 0
        left = pltpu.roll(slab, shift=1, axis=0)
        left = jnp.where(not_first_col, left, jnp.zeros_like(left))
        acc = acc + jnp.dot(left, w_ref[ky, 0], preferred_element_type=jnp.float32)
        # right tap (reads col w+1): shift -1 (== rows-1), mask col W-1
        right = pltpu.roll(slab, shift=rows - 1, axis=0)
        right = jnp.where(not_last_col, right, jnp.zeros_like(right))
        acc = acc + jnp.dot(right, w_ref[ky, 2], preferred_element_type=jnp.float32)
    return acc


def _conv_add_kernel(cur, prev, nxt, ab, w, bias, add, o_ref, pad, *, th, W, HT, cdt):
    """conv1 path: 3x3 conv + bias + per-batch temb add."""
    acc = _nsc_core(cur, prev, nxt, ab, w, pad, th=th, W=W, HT=HT, cdt=cdt)
    acc = acc + bias[...] + add[...]
    o_ref[0] = acc.reshape(th, W, -1).astype(o_ref.dtype)


def _conv_scres_kernel(cur, prev, nxt, ab, w, bias, xr_ref, scw, scb, o_ref, pad,
                       *, th, W, HT, cdt):
    """conv2 path with 1x1 conv_shortcut residual."""
    acc = _nsc_core(cur, prev, nxt, ab, w, pad, th=th, W=W, HT=HT, cdt=cdt) + bias[...]
    xr = xr_ref[0].astype(cdt).reshape(th * W, -1)        # bf16 operands, f32 accumulate
    acc = acc + jnp.dot(xr, scw[...], preferred_element_type=jnp.float32) + scb[...]
    o_ref[0] = acc.reshape(th, W, -1).astype(o_ref.dtype)


def _conv_idres_kernel(cur, prev, nxt, ab, w, bias, xr_ref, o_ref, pad,
                       *, th, W, HT, cdt):
    """conv2 path with identity residual (kept f32)."""
    acc = _nsc_core(cur, prev, nxt, ab, w, pad, th=th, W=W, HT=HT, cdt=cdt) + bias[...]
    acc = acc + xr_ref[0].astype(jnp.float32).reshape(th * W, -1)
    o_ref[0] = acc.reshape(th, W, -1).astype(o_ref.dtype)


def norm_silu_conv3x3(x, ab, w, bias, *, add=None, res_x=None, sc_w=None, sc_b=None,
                      compute_dtype=jnp.bfloat16, row_tile=None, cout_tile=None,
                      out_dtype=None):
    """out[n] = conv3x3(SiLU(x[n]*a[n]+b[n])) + bias + (temb add | shortcut)   (NHWC)."""
    N, H, W, Cin = x.shape
    Cout = w.shape[-1]
    out_dtype = out_dtype or x.dtype
    th = row_tile or _pick_row_tile(H, W, max(Cin, Cout))
    assert H % th == 0, (H, th)
    HT = H // th
    tc = cout_tile or _pick_cout_tile(Cout)
    assert Cout % tc == 0 and (tc == Cout or tc % 128 == 0), (Cout, tc)
    CT = Cout // tc
    cdt = compute_dtype
    # bf16 weights in HBM -> bf16 DMA + bf16 MXU operands (f32 accumulation).
    # TODO(synk): in a real deployment pre-cast/cache the bf16 weights once, offline.
    wq = w.astype(cdt)
    H_last = H - 1

    base_specs = [
        pl.BlockSpec((1, th, W, Cin), lambda n, j, i: (n, i, 0, 0)),
        # 1-row halo blocks; clamped index_map, zero-masked in-kernel at the border.
        pl.BlockSpec((1, 1, W, Cin),
                     lambda n, j, i: (n, jnp.maximum(i * th - 1, 0), 0, 0)),
        pl.BlockSpec((1, 1, W, Cin),
                     lambda n, j, i: (n, jnp.minimum(i * th + th, H_last), 0, 0)),
        pl.BlockSpec((1, 2, Cin), lambda n, j, i: (n, 0, 0)),
        pl.BlockSpec((3, 3, Cin, tc), lambda n, j, i: (0, 0, 0, j)),
        pl.BlockSpec((1, tc), lambda n, j, i: (0, j)),
    ]
    args = [x, x, x, ab, wq, bias.reshape(1, Cout)]
    kw = dict(th=th, W=W, HT=HT, cdt=cdt)

    if add is not None:
        kern = functools.partial(_conv_add_kernel, **kw)
        in_specs = base_specs + [pl.BlockSpec((1, tc), lambda n, j, i: (n, j))]
        args = args + [add]
    elif sc_w is not None:
        kern = functools.partial(_conv_scres_kernel, **kw)
        cx = res_x.shape[-1]
        in_specs = base_specs + [
            pl.BlockSpec((1, th, W, cx), lambda n, j, i: (n, i, 0, 0)),
            pl.BlockSpec((cx, tc), lambda n, j, i: (0, j)),
            pl.BlockSpec((1, tc), lambda n, j, i: (0, j)),
        ]
        args = args + [res_x, sc_w.astype(cdt), sc_b.reshape(1, Cout)]
    else:
        assert res_x is not None and res_x.shape[-1] == Cout
        kern = functools.partial(_conv_idres_kernel, **kw)
        in_specs = base_specs + [
            pl.BlockSpec((1, th, W, tc), lambda n, j, i: (n, i, 0, j)),
        ]
        args = args + [res_x]

    return pl.pallas_call(
        kern,
        out_shape=jax.ShapeDtypeStruct((N, H, W, Cout), out_dtype),
        grid=(N, CT, HT),
        in_specs=in_specs,
        out_specs=pl.BlockSpec((1, th, W, tc), lambda n, j, i: (n, i, 0, j)),
        scratch_shapes=[pltpu.VMEM(((th + 2) * W, Cin), cdt)],
        compiler_params=pltpu.CompilerParams(
            # every grid axis is independent -> all sharding-eligible on megacore chips
            dimension_semantics=("parallel", "parallel", "parallel"),
            vmem_limit_bytes=_vmem_limit()),
    )(*args)


# --------------------------------------------------------------- full block forward
def quant_resnet_block_2d_nhwc(x, temb, p, *, compute_dtype=jnp.bfloat16,
                               row_tile=None, cout_tile=None):
    """ResnetBlock2D forward on NHWC activations (preferred production entry point)."""
    N, H, W, Cin = x.shape
    g = p["groups"]
    ab1 = _gn_affine(gn_moments(x, row_tile=row_tile),
                     p["norm1_g"], p["norm1_b"], g, H * W)
    # time_emb_proj: tiny SiLU + (N,T)x(T,Cout) linear -> plain XLA, folded into
    # conv1's epilogue as a per-batch add (no dedicated kernel needed).
    t = temb * jax.nn.sigmoid(temb)
    t = jnp.dot(t, p["temb_w"], precision=jax.lax.Precision.HIGHEST) + p["temb_b"]
    h = norm_silu_conv3x3(x, ab1, p["conv1_w"], p["conv1_b"], add=t,
                          compute_dtype=compute_dtype, row_tile=row_tile,
                          cout_tile=cout_tile)
    ab2 = _gn_affine(gn_moments(h, row_tile=row_tile),
                     p["norm2_g"], p["norm2_b"], g, H * W)
    # TODO(synk): nn.Dropout is identity in eval mode; no kernel emitted.
    return norm_silu_conv3x3(h, ab2, p["conv2_w"], p["conv2_b"],
                             res_x=x, sc_w=p.get("sc_w"), sc_b=p.get("sc_b"),
                             compute_dtype=compute_dtype, row_tile=row_tile,
                             cout_tile=cout_tile)


def quant_resnet_block_2d(input_nchw, temb, p, **kw):
    """NCHW boundary wrapper matching QuantResnetBlock2D.forward (PyTorch layout).

    TODO(synk): in a full UNet keep activations NHWC end-to-end and call
    quant_resnet_block_2d_nhwc directly; these transposes are an extra HBM round trip.
    """
    x = jnp.transpose(input_nchw, (0, 2, 3, 1))            # NCHW -> NHWC
    out = quant_resnet_block_2d_nhwc(x, temb, p, **kw)
    return jnp.transpose(out, (0, 3, 1, 2))                # NHWC -> NCHW


# --------------------------------------------------------------- pure-JAX reference
def _ref_gn(x, gamma, beta, groups):
    N, H, W, C = x.shape
    xg = x.reshape(N, H * W, groups, C // groups)
    mean = xg.mean(axis=(1, 3), keepdims=True)
    var = ((xg - mean) ** 2).mean(axis=(1, 3), keepdims=True)
    xn = ((xg - mean) * jax.lax.rsqrt(var + EPS)).reshape(N, H, W, C)
    return xn * gamma.reshape(1, 1, 1, C) + beta.reshape(1, 1, 1, C)


def _ref_forward(input_nchw, temb, p):
    silu = lambda v: v * jax.nn.sigmoid(v)
    conv = lambda v, w: jax.lax.conv_general_dilated(
        v, w, (1, 1), "SAME", dimension_numbers=("NHWC", "HWIO", "NHWC"),
        precision=jax.lax.Precision.HIGHEST)
    x = jnp.transpose(input_nchw, (0, 2, 3, 1))
    h = silu(_ref_gn(x, p["norm1_g"], p["norm1_b"], p["groups"]))
    h = conv(h, p["conv1_w"]) + p["conv1_b"]
    t = jnp.dot(silu(temb), p["temb_w"], precision=jax.lax.Precision.HIGHEST) + p["temb_b"]
    h = h + t[:, None, None, :]
    h = silu(_ref_gn(h, p["norm2_g"], p["norm2_b"], p["groups"]))
    h = conv(h, p["conv2_w"]) + p["conv2_b"]
    if p.get("sc_w") is not None:
        sc = conv(x, p["sc_w"].reshape(1, 1, *p["sc_w"].shape)) + p["sc_b"]
    else:
        sc = x
    return jnp.transpose(sc + h, (0, 3, 1, 2))


def _make_params(key, *, cin, cout, temb_dim, groups, conv_shortcut):
    ks = jax.random.split(key, 12)
    f32 = jnp.float32
    p = {
        "groups": groups,
        "norm1_g": 1.0 + 0.1 * jax.random.normal(ks[0], (cin,), f32),
        "norm1_b": 0.1 * jax.random.normal(ks[1], (cin,), f32),
        "conv1_w": 0.2 * jax.random.normal(ks[2], (3, 3, cin, cout), f32),   # HWIO
        "conv1_b": 0.1 * jax.random.normal(ks[3], (cout,), f32),
        "temb_w": 0.2 * jax.random.normal(ks[4], (temb_dim, cout), f32),
        "temb_b": 0.1 * jax.random.normal(ks[5], (cout,), f32),
        "norm2_g": 1.0 + 0.1 * jax.random.normal(ks[6], (cout,), f32),
        "norm2_b": 0.1 * jax.random.normal(ks[7], (cout,), f32),
        "conv2_w": 0.2 * jax.random.normal(ks[8], (3, 3, cout, cout), f32),
        "conv2_b": 0.1 * jax.random.normal(ks[9], (cout,), f32),
    }
    if conv_shortcut:
        p["sc_w"] = 0.2 * jax.random.normal(ks[10], (cin, cout), f32)        # 1x1 conv
        p["sc_b"] = 0.1 * jax.random.normal(ks[11], (cout,), f32)
    return p


def _check(out, ref, tag, tol):
    ref = ref.astype(jnp.float32)
    scale = float(jnp.max(jnp.abs(ref)))
    err = float(jnp.max(jnp.abs(out.astype(jnp.float32) - ref)))
    assert err <= tol * max(1.0, scale), f"{tag}: err={err} scale={scale} tol={tol}"


if __name__ == "__main__":
    # Case 1: Cin != Cout -> 1x1 conv_shortcut; row_tile=8 forces HT=2 (halo path).
    N, H, W, TEMB = 2, 16, 16, 16
    p1 = _make_params(jax.random.PRNGKey(0), cin=4, cout=8, temb_dim=TEMB, groups=2,
                      conv_shortcut=True)
    kx, kt = jax.random.split(jax.random.PRNGKey(1))
    x1 = jax.random.normal(kx, (N, 4, H, W), jnp.float32)     # NCHW like PyTorch
    t1 = jax.random.normal(kt, (N, TEMB), jnp.float32)
    ref1 = jax.block_until_ready(_ref_forward(x1, t1, p1))

    out1_f32 = jax.block_until_ready(
        quant_resnet_block_2d(x1, t1, p1, compute_dtype=jnp.float32, row_tile=8))
    assert out1_f32.shape == (N, 8, H, W), out1_f32.shape
    _check(out1_f32, ref1, "case1/f32", 5e-3)

    out1_bf16 = jax.block_until_ready(
        quant_resnet_block_2d(x1, t1, p1, compute_dtype=jnp.bfloat16, row_tile=8))
    _check(out1_bf16, ref1, "case1/bf16", 2e-2)

    # Case 2: identity shortcut (Cin == Cout), default tiling, bf16 MXU path.
    p2 = _make_params(jax.random.PRNGKey(2), cin=8, cout=8, temb_dim=TEMB, groups=4,
                      conv_shortcut=False)
    kx2, kt2 = jax.random.split(jax.random.PRNGKey(3))
    x2 = jax.random.normal(kx2, (N, 8, H, W), jnp.float32)
    t2 = jax.random.normal(kt2, (N, TEMB), jnp.float32)
    out2 = jax.block_until_ready(quant_resnet_block_2d(x2, t2, p2))
    _check(out2, _ref_forward(x2, t2, p2), "case2/bf16", 2e-2)

    # Case 3: lane-dense channels; exercises Cout tiling (CT=2) and row tiling (HT=2).
    p3 = _make_params(jax.random.PRNGKey(4), cin=128, cout=256, temb_dim=32, groups=32,
                      conv_shortcut=True)
    kx3, kt3 = jax.random.split(jax.random.PRNGKey(5))
    x3 = jax.random.normal(kx3, (1, 128, 16, 8), jnp.float32)
    t3 = jax.random.normal(kt3, (1, 32), jnp.float32)
    out3 = jax.block_until_ready(
        quant_resnet_block_2d(x3, t3, p3, row_tile=8, cout_tile=128))
    _check(out3, _ref_forward(x3, t3, p3), "case3/bf16", 2e-2)

    print("KERNEL_OK")
</pallas_src>

<mosaic_0001>
module attributes {stable_mosaic.version = 11 : i64} {
  func.func @_gn_moments_kernel(%arg0: i32, %arg1: i32, %arg2: memref<1x8x16x4xf32, #tpu.memory_space<vmem>>, %arg3: memref<1x2x4xf32, #tpu.memory_space<vmem>>) attributes {dimension_semantics = [#tpu.dimension_semantics<parallel>, #tpu.dimension_semantics<arbitrary>], iteration_bounds = array<i64: 2, 2>, scalar_prefetch = 0 : i64, scratch_operands = 0 : i64, tpu.core_type = #tpu.core_type<tc>, window_params = [{transform_indices = @transform_0, window_bounds = array<i64: 1, 8, 16, 4>}, {transform_indices = @transform_1, window_bounds = array<i64: 1, 2, 4>}]} {
    %c0_i32 = arith.constant 0 : i32
    %0 = arith.cmpi eq, %arg1, %c0_i32 : i32
    %1 = arith.extui %0 : i1 to i32
    %c0_i32_0 = arith.constant 0 : i32
    %2 = arith.cmpi ne, %1, %c0_i32_0 : i32
    scf.if %2 {
      %cst_11 = arith.constant 0.000000e+00 : f32
      %18 = vector.broadcast %cst_11 : f32 to vector<1x2x4xf32>
      %c0_12 = arith.constant 0 : index
      %c0_13 = arith.constant 0 : index
      %c0_14 = arith.constant 0 : index
      %19 = vector.load %arg3[%c0_12, %c0_13, %c0_14] : memref<1x2x4xf32, #tpu.memory_space<vmem>>, vector<1x2x4xf32>
      tpu.vector_store %arg3[%c0_12, %c0_13, %c0_14], %18 {strides = array<i32>} : memref<1x2x4xf32, #tpu.memory_space<vmem>>, vector<1x2x4xf32>,
    } else {
    }
    %c0 = arith.constant 0 : index
    %c0_1 = arith.constant 0 : index
    %c0_2 = arith.constant 0 : index
    %c0_3 = arith.constant 0 : index
    %3 = vector.load %arg2[%c0, %c0_1, %c0_2, %c0_3] : memref<1x8x16x4xf32, #tpu.memory_space<vmem>>, vector<1x8x16x4xf32>
    %4 = vector.shape_cast %3 : vector<1x8x16x4xf32> to vector<8x16x4xf32>
    %5 = vector.shape_cast %4 : vector<8x16x4xf32> to vector<128x4xf32>
    %cst = arith.constant dense<0.000000e+00> : vector<4xf32>
    %6 = vector.multi_reduction <add>, %5, %cst [0] : vector<128x4xf32> to vector<4xf32>
    %7 = vector.shape_cast %6 : vector<4xf32> to vector<1x4xf32>
    %8 = arith.mulf %5, %5 : vector<128x4xf32>
    %cst_4 = arith.constant dense<0.000000e+00> : vector<4xf32>
    %9 = vector.multi_reduction <add>, %8, %cst_4 [0] : vector<128x4xf32> to vector<4xf32>
    %10 = vector.shape_cast %9 : vector<4xf32> to vector<1x4xf32>
    %11 = tpu.concatenate %7, %10 in 0 : vector<1x4xf32>, vector<1x4xf32> -> vector<2x4xf32>
    %c0_5 = arith.constant 0 : index
    %c0_6 = arith.constant 0 : index
    %c0_7 = arith.constant 0 : index
    %12 = vector.load %arg3[%c0_5, %c0_6, %c0_7] : memref<1x2x4xf32, #tpu.memory_space<vmem>>, vector<1x2x4xf32>
    %13 = vector.shape_cast %12 : vector<1x2x4xf32> to vector<2x4xf32>
    %14 = arith.addf %13, %11 : vector<2x4xf32>
    %c0_8 = arith.constant 0 : index
    %c0_9 = arith.constant 0 : index
    %c0_10 = arith.constant 0 : index
    %15 = vector.load %arg3[%c0_8, %c0_9, %c0_10] : memref<1x2x4xf32, #tpu.memory_space<vmem>>, vector<1x2x4xf32>
    %16 = vector.shape_cast %15 : vector<1x2x4xf32> to vector<2x4xf32>
    %17 = vector.shape_cast %14 : vector<2x4xf32> to vector<1x2x4xf32>
    tpu.vector_store %arg3[%c0_8, %c0_9, %c0_10], %17 {strides = array<i32>} : memref<1x2x4xf32, #tpu.memory_space<vmem>>, vector<1x2x4xf32>,
    return
  }
  func.func @transform_0(%arg0: i32, %arg1: i32) -> (i32, i32, i32, i32) {
    %c0_i32 = arith.constant 0 : i32
    %c0_i32_0 = arith.constant 0 : i32
    %c0_i32_1 = arith.constant 0 : i32
    return %arg0, %arg1, %c0_i32, %c0_i32_0 : i32, i32, i32, i32
  }
  func.func @transform_1(%arg0: i32, %arg1: i32) -> (i32, i32, i32) {
    %c0_i32 = arith.constant 0 : i32
    %c0_i32_0 = arith.constant 0 : i32
    %c0_i32_1 = arith.constant 0 : i32
    return %arg0, %c0_i32, %c0_i32_0 : i32, i32, i32
  }
}

</mosaic_0001>

<llo_original>
// kernel: tpu_custom_call.1
$region0: #{tpu_custom_call.1}
  #allocation0 [shape = 'u32[]', space=smem, size = 0x4, offset = 0x4, fixed_abs, tag = 'smem constant byte address 0x4 - core index']
  #allocation1 [shape = 'u32[144,128]{1,0:T(1,128)}', space=vmem, size = 0x12000, scoped, tag = 'internal scratch']
  %s0 = inlined_call_operand.vmem [shape: f32[2,16,16,4], index: 0, kind: input, shape index: {}]
  %s1 = inlined_call_operand.hbm [shape: f32[2,2,4], index: 1, kind: output, shape index: {}]
  %s2 = sld [smem:[#allocation0]]
  $region41: #{tpu_custom_call.1} parent=0
    _
  %s4 = ssub.s32 1, %s2
  %s5 = scalar_select 0, %s4, %s2
  $region1: #{tpu_custom_call.1} parent=0
    #allocation2 [shape = 'u8[2048]{0}', space=vmem, size = 0x800, scoped, tag = 'output window, operand 0']
    #allocation3 [shape = 's32[2]{0}', space=sflag, size = 0x8, scoped, tag = 'scoped memory for tpu_custom_call.1']
    %6 = vsyncpa [#allocation3], 0
    %s7 = scalar_lea.sflag [#allocation3], 1
    %8 = vsyncpa %s7, 0
    loop: start=0, step=1, limit=6
    $region2: #{tpu_custom_call.1} parent=1 // loop_pre_header
      _
    $region3: #{tpu_custom_call.1} parent=1 // loop_header
      %s10 = sphi 0, %s14
      %p11 = scmp.ge.s32.totalorder %s10, 6
      %s17 = sphi 0, %s29
      %s18 = sphi 0, %s25
      %s19 = sphi 0, %s17
      %s20 = sphi 0, %s18
      %s21 = sphi 0, %s19
      %s22 = sphi 0, %s20
      %s34 = sphi 0, %s36
      %s37 = sphi 0, %s34
      %s38 = sphi 0, %s37
      %s54 = sphi 0, %s38
      %s60 = sphi 0, %s62
      %s63 = sphi 0, %s60
      %s64 = sphi 0, %s63
      %s80 = sphi 0, %s64
    $region4: #{tpu_custom_call.1} parent=1 // loop_header_branch
      %13 = sbr.rel (%p11) target = $region8
    $region5: #{tpu_custom_call.1} parent=1 // loop_body
      %s15 = ssub.s32 %s10, 1
      %s16 = ssub.s32 %s10, 2
      %s23 = sadd.s32 1, %s18
      %p24 = scmp.ge.s32.totalorder %s23, 2
      %s25 = scalar_select %p24, 0, %s23
      %s26 = sadd.s32 1, %s17
      %s27 = scalar_select %p24, %s26, %s17
      %p28 = scmp.ge.s32.totalorder %s27, 2
      %s29 = scalar_select %p28, 0, %s27
      %s30 = ssub.s32 %s17, %s29
      %s31 = ssub.s32 %s18, %s25
      %s32 = sor.u32 %s30, %s31
      %p33 = scmp.eq.s32.totalorder %s32, 0
      %s35 = sadd.s32 %s34, 1
      %s36 = scalar_select %p33, %s34, %s35
      %p39 = pneg %p33
      %p40 = scmp.eq.s32.totalorder %s10, 3
      %p41 = por %p39, %p40
      %p42 = scmp.ne.s32.totalorder %s34, %s37
      %p43 = scmp.eq.s32.totalorder %s10, 0
      %p44 = por %p42, %p43
      %p45 = scmp.ne.s32.totalorder %s34, %s37
      %p46 = scmp.eq.s32.totalorder %s15, 3
      %p47 = por %p45, %p46
      %p48 = scmp.ne.s32.totalorder %s37, %s38
      %p49 = scmp.eq.s32.totalorder %s15, 0
      %p50 = por %p48, %p49
      %p51 = scmp.ne.s32.totalorder %s37, %s38
      %p52 = scmp.eq.s32.totalorder %s16, 3
      %p53 = por %p51, %p52
      %p55 = scmp.ne.s32.totalorder %s38, %s54
      %p56 = scmp.eq.s32.totalorder %s16, 0
      %p57 = por %p55, %p56
      %s58 = ssub.s32 %s17, %s29
      %p59 = scmp.eq.s32.totalorder %s58, 0
      %s61 = sadd.s32 %s60, 1
      %s62 = scalar_select %p59, %s60, %s61
      %p65 = pneg %p59
      %p66 = scmp.eq.s32.totalorder %s10, 3
      %p67 = por %p65, %p66
      %p68 = scmp.ne.s32.totalorder %s60, %s63
      %p69 = scmp.eq.s32.totalorder %s10, 0
      %p70 = por %p68, %p69
      %p71 = scmp.ne.s32.totalorder %s60, %s63
      %p72 = scmp.eq.s32.totalorder %s15, 3
      %p73 = por %p71, %p72
      %p74 = scmp.ne.s32.totalorder %s63, %s64
      %p75 = scmp.eq.s32.totalorder %s15, 0
      %p76 = por %p74, %p75
      %p77 = scmp.ne.s32.totalorder %s63, %s64
      %p78 = scmp.eq.s32.totalorder %s16, 3
      %p79 = por %p77, %p78
      %p81 = scmp.ne.s32.totalorder %s64, %s80
      %p82 = scmp.eq.s32.totalorder %s16, 0
      %p83 = por %p81, %p82
      %p84 = scmp.le.s32.totalorder 1, %s10
      %p85 = scmp.lt.s32.totalorder %s10, 5
      %p86 = pnand %p84, %p85
      %p87 = pneg %p86
      // Predicated region
      $region9: #{tpu_custom_call.1} parent=5 // pred_check
        _
      $region10: #{tpu_custom_call.1} parent=5 // pred_check_branch
        %89 = sbr.rel (%p86) target = $region12
      $region11: #{tpu_custom_call.1} parent=5 // pred_region
        %s90 = ssub.s32 %s10, 1
      $region12: #{tpu_custom_call.1} parent=5 // pred_fallthru
        _
      %p91 = scmp.lt.s32.totalorder %s10, 4
      // Predicated region
      $region13: #{tpu_custom_call.1} parent=5 // pred_check
        %p92 = pneg %p91
      $region14: #{tpu_custom_call.1} parent=5 // pred_check_branch
        %94 = sbr.rel (%p92) target = $region16
      $region15: #{tpu_custom_call.1} parent=5 // pred_region
        // Predicated region
        $region17: #{tpu_custom_call.1} parent=15 // pred_check
          %p95 = pneg %p44
        $region18: #{tpu_custom_call.1} parent=15 // pred_check_branch
          %97 = sbr.rel (%p95) target = $region20
        $region19: #{tpu_custom_call.1} parent=15 // pred_region
          %s98 = smul.u32 8, %s18
          %p99 = scmp.lt.s32.totalorder %s17, 1
          %s100 = scalar_select %p99, %s17, 1
          %p101 = scmp.lt.s32.totalorder %s98, 15
          %s102 = scalar_select %p101, %s98, 15
          %s103 = smul.addr %s102, 2
          %s104 = smul.addr %s100, 32
          %s105 = sadd.s32 %s103, %s104
          %s106 = smul.addr %s105, 8
          %s107 = scalar_lea.vmem %s0, %s106
          %s108 = smul.u32 8, %s18
        $region20: #{tpu_custom_call.1} parent=15 // pred_fallthru
          _
      $region16: #{tpu_custom_call.1} parent=5 // pred_fallthru
        _
      %p109 = scmp.le.s32.totalorder 1, %s10
      %p110 = scmp.lt.s32.totalorder %s10, 5
      %p111 = pnand %p109, %p110
      %p112 = pneg %p111
      // Predicated region
      $region21: #{tpu_custom_call.1} parent=5 // pred_check
        _
      $region22: #{tpu_custom_call.1} parent=5 // pred_check_branch
        %114 = sbr.rel (%p111) target = $region24
      $region23: #{tpu_custom_call.1} parent=5 // pred_region
        %s115 = ssub.s32 %s10, 1
        %s116 = smul.u32 8, %s20
        %p117 = scmp.lt.s32.totalorder %s19, 1
        %s118 = scalar_select %p117, %s19, 1
        %p119 = scmp.lt.s32.totalorder %s116, 15
        %s120 = scalar_select %p119, %s116, 15
        %s121 = smul.addr %s120, 2
        %s122 = smul.addr %s118, 32
        %s123 = sadd.s32 %s121, %s122
        %s124 = smul.addr %s123, 8
        %s125 = scalar_lea.vmem %s0, %s124
        %p126 = pneg %p50
        %p127 = pneg %p47
        %p128 = pneg %p76
        %p129 = pneg %p73
        %s130 = sand.u32 %s63, 1
        %s131 = scalar_lea.sflag [#allocation3], %s130
        %s132 = sand.u32 %s63, 1
        %s133 = smul.addr %s132, 2
        %s134 = scalar_lea.vmem [#allocation2], %s133
        %s135 = smul.u32 8, %s20
        %p136 = scmp.lt.s32.totalorder %s19, 1
        %s137 = scalar_select %p136, %s19, 1
        %p138 = scmp.lt.s32.totalorder %s135, 15
        %s139 = scalar_select %p138, %s135, 15
        %s140 = smul.addr %s139, 2
        %s141 = smul.addr %s137, 32
        %s142 = sadd.s32 %s140, %s141
        %s143 = smul.addr %s142, 8
        %s144 = scalar_lea.vmem %s0, %s143
        %s145 = smul.u32 8, %s20
        %p146 = scmp.eq.s32.totalorder %s20, 0
        // Predicated region
        $region25: #{tpu_custom_call.1} parent=23 // pred_check
          %p147 = pneg %p146
        $region26: #{tpu_custom_call.1} parent=23 // pred_check_branch
          %149 = sbr.rel (%p147) target = $region28
        $region27: #{tpu_custom_call.1} parent=23 // pred_region
          %vm150 = vcmask 25600
          %151 = vst.msk [vmem:[%s134] sm:$0x3] %vm150, 0.0
        $region28: #{tpu_custom_call.1} parent=23 // pred_fallthru
          _
        %v152 = vld [vmem:[%s144] sm:$0xff]
        %v153 = vld [vmem:[%s144 + $0x8] sm:$0xff]
        %v154 = vld [vmem:[%s144 + $0x10] sm:$0xff]
        %v155 = vld [vmem:[%s144 + $0x18] sm:$0xff]
        %v156 = vld [vmem:[%s144 + $0x20] sm:$0xff]
        %v157 = vld [vmem:[%s144 + $0x28] sm:$0xff]
        %v158 = vld [vmem:[%s144 + $0x30] sm:$0xff]
        %v159 = vld [vmem:[%s144 + $0x38] sm:$0xff]
        %v160 = vld [vmem:[%s144 + $0x40] sm:$0xff]
        %v161 = vld [vmem:[%s144 + $0x48] sm:$0xff]
        %v162 = vld [vmem:[%s144 + $0x50] sm:$0xff]
        %v163 = vld [vmem:[%s144 + $0x58] sm:$0xff]
        %v164 = vld [vmem:[%s144 + $0x60] sm:$0xff]
        %v165 = vld [vmem:[%s144 + $0x68] sm:$0xff]
        %v166 = vld [vmem:[%s144 + $0x70] sm:$0xff]
        %v167 = vld [vmem:[%s144 + $0x78] sm:$0xff]
        %vm168 = vcmask 31744
        %v169 = vsel %vm168, %v152, 0.0
        %v170 = vsel %vm168, %v153, 0.0
        %v171 = vadd.f32 %v169, %v170
        %v172 = vsel %vm168, %v154, 0.0
        %v173 = vadd.f32 %v171, %v172
        %v174 = vsel %vm168, %v155, 0.0
        %v175 = vadd.f32 %v173, %v174
        %v176 = vsel %vm168, %v156, 0.0
        %v177 = vadd.f32 %v175, %v176
        %v178 = vsel %vm168, %v157, 0.0
        %v179 = vadd.f32 %v177, %v178
        %v180 = vsel %vm168, %v158, 0.0
        %v181 = vadd.f32 %v179, %v180
        %v182 = vsel %vm168, %v159, 0.0
        %v183 = vadd.f32 %v181, %v182
        %v184 = vsel %vm168, %v160, 0.0
        %v185 = vadd.f32 %v183, %v184
        %v186 = vsel %vm168, %v161, 0.0
        %v187 = vadd.f32 %v185, %v186
        %v188 = vsel %vm168, %v162, 0.0
        %v189 = vadd.f32 %v187, %v188
        %v190 = vsel %vm168, %v163, 0.0
        %v191 = vadd.f32 %v189, %v190
        %v192 = vsel %vm168, %v164, 0.0
        %v193 = vadd.f32 %v191, %v192
        %v194 = vsel %vm168, %v165, 0.0
        %v195 = vadd.f32 %v193, %v194
        %v196 = vsel %vm168, %v166, 0.0
        %v197 = vadd.f32 %v195, %v196
        %v198 = vsel %vm168, %v167, 0.0
        %v199 = vadd.f32 %v197, %v198
        %v200 = vrot.slane %v199, 4
        %v201 = vadd.f32 %v199, %v200
        %v202 = vrot.slane %v201, 2
        %v203 = vadd.f32 %v201, %v202
        %v204 = vrot.slane %v203, 1
        %v205 = vadd.f32 %v203, %v204
        %v206 = vmul.f32 %v152, %v152
        %v207 = vmul.f32 %v153, %v153
        %v208 = vmul.f32 %v154, %v154
        %v209 = vmul.f32 %v155, %v155
        %v210 = vmul.f32 %v156, %v156
        %v211 = vmul.f32 %v157, %v157
        %v212 = vmul.f32 %v158, %v158
        %v213 = vmul.f32 %v159, %v159
        %v214 = vmul.f32 %v160, %v160
        %v215 = vmul.f32 %v161, %v161
        %v216 = vmul.f32 %v162, %v162
        %v217 = vmul.f32 %v163, %v163
        %v218 = vmul.f32 %v164, %v164
        %v219 = vmul.f32 %v165, %v165
        %v220 = vmul.f32 %v166, %v166
        %v221 = vmul.f32 %v167, %v167
        %v222 = vsel %vm168, %v206, 0.0
        %v223 = vsel %vm168, %v207, 0.0
        %v224 = vadd.f32 %v222, %v223
        %v225 = vsel %vm168, %v208, 0.0
        %v226 = vadd.f32 %v224, %v225
        %v227 = vsel %vm168, %v209, 0.0
        %v228 = vadd.f32 %v226, %v227
        %v229 = vsel %vm168, %v210, 0.0
        %v230 = vadd.f32 %v228, %v229
        %v231 = vsel %vm168, %v211, 0.0
        %v232 = vadd.f32 %v230, %v231
        %v233 = vsel %vm168, %v212, 0.0
        %v234 = vadd.f32 %v232, %v233
        %v235 = vsel %vm168, %v213, 0.0
        %v236 = vadd.f32 %v234, %v235
        %v237 = vsel %vm168, %v214, 0.0
        %v238 = vadd.f32 %v236, %v237
        %v239 = vsel %vm168, %v215, 0.0
        %v240 = vadd.f32 %v238, %v239
        %v241 = vsel %vm168, %v216, 0.0
        %v242 = vadd.f32 %v240, %v241
        %v243 = vsel %vm168, %v217, 0.0
        %v244 = vadd.f32 %v242, %v243
        %v245 = vsel %vm168, %v218, 0.0
        %v246 = vadd.f32 %v244, %v245
        %v247 = vsel %vm168, %v219, 0.0
        %v248 = vadd.f32 %v246, %v247
        %v249 = vsel %vm168, %v220, 0.0
        %v250 = vadd.f32 %v248, %v249
        %v251 = vsel %vm168, %v221, 0.0
        %v252 = vadd.f32 %v250, %v251
        %v253 = vrot.slane %v252, 4
        %v254 = vadd.f32 %v252, %v253
        %v255 = vrot.slane %v254, 2
        %v256 = vadd.f32 %v254, %v255
        %v257 = vrot.slane %v256, 1
        %v258 = vadd.f32 %v256, %v257
        %vm259 = vcmask 1040384
        %v260 = vsel %vm259, %v205, %v258
        %v261 = vld [vmem:[%s134] sm:$0x3]
        %v262 = vadd.f32 %v261, %v260
        %vm263 = vcmask 25600
        %264 = vst.msk [vmem:[%s134] sm:$0x3] %vm263, %v262
        %s265 = sand.u32 %s63, 1
        %s266 = scalar_lea.sflag [#allocation3], %s265
        %s267 = sand.u32 %s63, 1
        %s268 = smul.addr %s267, 2
        %s269 = scalar_lea.vmem [#allocation2], %s268
        // Predicated region
        $region29: #{tpu_custom_call.1} parent=23 // pred_check
          %p270 = pneg %p73
        $region30: #{tpu_custom_call.1} parent=23 // pred_check_branch
          %272 = sbr.rel (%p270) target = $region32
        $region31: #{tpu_custom_call.1} parent=23 // pred_region
          %s274 = ssub.s32 32, 32
          %275 = vsyncadd %s266, %s274
          %s276 = smul.addr %s19, 32
          %s277 = scalar_lea.hbm %s1, %s276
          %s279 = sshll.u32 %s269, 4
          %s280 = int_to_ptr.vmem [resolvable:$true] %s279
          %282 = dma.vmem_to_hbm [thread:$0]  %s280, 32, %s277, %s266
        $region32: #{tpu_custom_call.1} parent=23 // pred_fallthru
          _
      $region24: #{tpu_custom_call.1} parent=5 // pred_fallthru
        _
      %p283 = scmp.le.s32.totalorder 2, %s10
      // Predicated region
      $region33: #{tpu_custom_call.1} parent=5 // pred_check
        %p284 = pneg %p283
      $region34: #{tpu_custom_call.1} parent=5 // pred_check_branch
        %286 = sbr.rel (%p284) target = $region36
      $region35: #{tpu_custom_call.1} parent=5 // pred_region
        %s287 = ssub.s32 %s10, 2
        // Predicated region
        $region37: #{tpu_custom_call.1} parent=35 // pred_check
          %p288 = pneg %p79
        $region38: #{tpu_custom_call.1} parent=35 // pred_check_branch
          %290 = sbr.rel (%p288) target = $region40
        $region39: #{tpu_custom_call.1} parent=35 // pred_region
          %s291 = sand.u32 %s64, 1
          %s292 = scalar_lea.sflag [#allocation3], %s291
          %s293 = sand.u32 %s64, 1
          %s294 = smul.addr %s293, 2
          %s295 = scalar_lea.vmem [#allocation2], %s294
          %296 = dma.done %s292, 32
        $region40: #{tpu_custom_call.1} parent=35 // pred_fallthru
          _
      $region36: #{tpu_custom_call.1} parent=5 // pred_fallthru
        _
    $region6: #{tpu_custom_call.1} parent=1 // loop_footer
      %s14 = sadd.s32 1, %s10
    $region7: #{tpu_custom_call.1} parent=1 // loop_footer_branch
      %9 = sbr.rel target = $region3
    $region8: #{tpu_custom_call.1} parent=1 // loop_exit
      _
    %297 = vsyncpa [#allocation3], 1
    %s298 = scalar_lea.sflag [#allocation3], 1
    %299 = vsyncpa %s298, 1

</llo_original>
